<compile_context>
chip_gen: v5e
topology: v5e:2x2
jax: 0.10.0
libtpu: 0.0.40
codegen_flags: <defaults>
</compile_context>

<pallas_src>
import functools
import math

import jax
import jax.numpy as jnp
from jax.experimental import pallas as pl
from jax.experimental.pallas import tpu as pltpu


def _make_kernel(num_layers, K, D, TB):
    doubleK = 2 * K
    N = doubleK * TB          # lane extent of one activation block
    n_top = K * TB            # columns of the "mean/weight" half (rows r < K)

    def kernel(x_ref, wh_ref, bh_ref, w0_ref, b0_ref, out_ref):
        # x_ref : (D, N) input block, column index = r*TB + b_local
        # wh_ref: (num_layers, D, D)  hidden-layer weights, (out, in) layout
        # bh_ref: (num_layers, D, 1)  hidden-layer biases (f32)
        # w0_ref: (D, D), b0_ref: (D, 1)  final layer
        mm_dt = wh_ref.dtype                      # f32 or bf16 (review item)

        x = x_ref[...].astype(jnp.float32)

        def layer(v, w, b):
            # y^T = W @ x^T + b  ==  x @ W.T + b in the untransposed view.
            return jnp.dot(w, v.astype(mm_dt),
                           preferred_element_type=jnp.float32) + b

        if num_layers <= 4:
            for l in range(num_layers):           # static unroll (small stacks)
                x = jnp.maximum(layer(x, wh_ref[l], bh_ref[l]), 0.0)
        else:
            # Constant live set for deep stacks (perf-review item).
            def body(l, v):
                return jnp.maximum(layer(v, wh_ref[l], bh_ref[l]), 0.0)
            x = jax.lax.fori_loop(0, num_layers, body, x)

        x = layer(x, w0_ref[...], b0_ref[...])     # layer0, no activation

        # ---------------- epilogue (lane-dense, no full-shape iota/where) ---
        # Bottom half (rows r >= K) = contiguous columns [n_top, N): relu.
        top = x[:, :n_top]
        bot = jnp.maximum(x[:, n_top:], 0.0)
        out_ref[...] = jnp.concatenate([top, bot], axis=-1).astype(out_ref.dtype)

        # Softmax over the K "weight" logits (feature D-1) of the top half.
        # For a fixed r the values live in one contiguous (1, TB) lane slab,
        # so the per-batch reduction over r is an elementwise max/sum across
        # the K slabs.
        w_row = x[D - 1:D, :n_top]                               # (1, K*TB)
        slabs = [w_row[:, r * TB:(r + 1) * TB] for r in range(K)]
        m = slabs[0]
        for r in range(1, K):
            m = jnp.maximum(m, slabs[r])
        exps = [jnp.exp(s - m) for s in slabs]
        denom = exps[0]
        for r in range(1, K):
            denom = denom + exps[r]
        inv = pl.reciprocal(denom, approx=False)                 # exact 1/x
        sm = jnp.concatenate([e * inv for e in exps], axis=-1)   # (1, K*TB)
        # Single-row overwrite of the weight column (lane-dense).
        out_ref[D - 1:D, :n_top] = sm.astype(out_ref.dtype)

    return kernel


def _pick_batch_tile(B, doubleK, D):
    """Batch tile TB: each block is (D, 2K*TB).

    Keep blocks ~<= 1 MiB so in/out double buffers + in-kernel temporaries
    stay far below v5e's 16 MiB default scoped VMEM (and v7x's 64 MiB
    physical VMEM), and prefer >= 2 grid steps so the "parallel" batch axis
    can shard across v7x's two TensorCores.
    """
    bytes_per_batch = doubleK * D * 4
    cap = max(8, ((1 << 20) // bytes_per_batch) // 8 * 8)
    if B > cap:
        return cap
    if B >= 16:
        half = (B + 1) // 2
        return min(cap, max(8, -(-half // 8) * 8))
    return B


def nmp_qem_projection_forward(query_embedding, relation_embedding, params,
                               dim, num_layers, matmul_dtype=jnp.float32):
    """JAX/Pallas equivalent of NMP_QEM_Projection.forward.

    query_embedding:    [B, 2K, dim+1]
    relation_embedding: [B, dim]
    params: wh [L, D, D], bh [L, D, 1], w0 [D, D], b0 [D, 1]  (W in (out, in)
            layout, i.e. the PyTorch nn.Linear layout)
    matmul_dtype: jnp.float32 (exact) or jnp.bfloat16 (faster MXU operands on
            v6e/v7x, ~1e-2 accuracy; accumulation stays f32).
    returns: [B, 2K, dim+1]
    """
    B, doubleK, D = query_embedding.shape
    assert D == dim + 1 and doubleK % 2 == 0 and num_layers >= 1
    K = doubleK // 2
    dt = query_embedding.dtype

    TB = _pick_batch_tile(B, doubleK, D)
    nb = -(-B // TB)                 # cdiv: robust for non-divisible batches
    B_pad = nb * TB
    N = doubleK * TB

    # Wrapper prologue (one fused XLA pass): add the 1.0-padded relation,
    # pad the batch to a tile multiple, and re-lay into the lane-dense,
    # batch-blocked transposed layout
    #     xt[i, d, r*TB + b] = (query + rel)[i*TB + b, r, d]
    rel = jnp.concatenate(
        [relation_embedding.astype(dt), jnp.ones((B, 1), dt)], axis=-1)
    x0 = query_embedding + rel[:, None, :]
    if B_pad != B:
        x0 = jnp.pad(x0, ((0, B_pad - B), (0, 0), (0, 0)))
    xt = x0.reshape(nb, TB, doubleK, D).transpose(0, 3, 2, 1).reshape(nb, D, N)

    wh = params["wh"].astype(matmul_dtype)
    w0 = params["w0"].astype(matmul_dtype)
    bh = params["bh"].astype(jnp.float32)
    b0 = params["b0"].astype(jnp.float32)

    kernel = _make_kernel(num_layers, K, D, TB)

    out_t = pl.pallas_call(
        kernel,
        out_shape=jax.ShapeDtypeStruct((nb, D, N), dt),
        grid=(nb,),
        in_specs=[
            pl.BlockSpec((None, D, N), lambda i: (i, 0, 0)),        # activations
            pl.BlockSpec((num_layers, D, D), lambda i: (0, 0, 0)),  # resident weights
            pl.BlockSpec((num_layers, D, 1), lambda i: (0, 0, 0)),
            pl.BlockSpec((D, D), lambda i: (0, 0)),
            pl.BlockSpec((D, 1), lambda i: (0, 0)),
        ],
        out_specs=pl.BlockSpec((None, D, N), lambda i: (i, 0, 0)),
        compiler_params=pltpu.CompilerParams(
            dimension_semantics=("parallel",)),
    )(xt, wh, bh, w0, b0)

    # Wrapper epilogue (one fused XLA pass): undo the blocked transpose.
    out = out_t.reshape(nb, D, doubleK, TB).transpose(0, 3, 2, 1)
    out = out.reshape(B_pad, doubleK, D)
    return out[:B] if B_pad != B else out


def init_params(key, dim, num_layers, dtype=jnp.float32):
    """Xavier-uniform weights (as in the torch module), default-Linear biases.
    Weights are stored in PyTorch (out_features, in_features) layout."""
    D = dim + 1
    k = jax.random.split(key, 4)
    wb = math.sqrt(6.0 / (2 * D))     # xavier_uniform bound for a (D, D) layer
    bb = 1.0 / math.sqrt(D)           # nn.Linear default bias bound
    return {
        "wh": jax.random.uniform(k[0], (num_layers, D, D), dtype, -wb, wb),
        "bh": jax.random.uniform(k[1], (num_layers, D, 1), dtype, -bb, bb),
        "w0": jax.random.uniform(k[2], (D, D), dtype, -wb, wb),
        "b0": jax.random.uniform(k[3], (D, 1), dtype, -bb, bb),
    }


def _reference_forward(query, relation, params, dim, num_layers):
    """Pure-JAX reference mirroring the PyTorch forward (sanity check)."""
    B, doubleK, D = query.shape
    K = doubleK // 2
    rel = jnp.concatenate([relation, jnp.ones((B, 1), query.dtype)], axis=-1)
    x = query + rel[:, None, :]
    for l in range(num_layers):
        x = jax.nn.relu(x @ params["wh"][l].T + params["bh"][l][:, 0])
    x = x @ params["w0"].T + params["b0"][:, 0]
    top, bot = x[:, :K, :], x[:, K:, :]
    w = jax.nn.softmax(top[..., dim:], axis=1)
    new_top = jnp.concatenate([top[..., :dim], w], axis=-1)
    return jnp.concatenate([new_top, jax.nn.relu(bot)], axis=1)


if __name__ == "__main__":
    # Small, forward-consistent shapes: dim=15 -> d+1=16; K=8 -> 2K=16.
    # batch=20 is deliberately not a multiple of the batch tile (16), so the
    # padded-tail path and the 2-step "parallel" grid are both exercised.
    dim = 15
    K = 8
    batch = 20
    num_layers = 2

    key = jax.random.PRNGKey(0)
    kp, kq, kr = jax.random.split(key, 3)
    params = init_params(kp, dim, num_layers)

    query = jax.random.normal(kq, (batch, 2 * K, dim + 1), dtype=jnp.float32)
    relation = jax.random.normal(kr, (batch, dim), dtype=jnp.float32)

    fwd = jax.jit(functools.partial(nmp_qem_projection_forward,
                                    dim=dim, num_layers=num_layers))
    out = jax.block_until_ready(fwd(query, relation, params))
    ref = jax.block_until_ready(
        _reference_forward(query, relation, params, dim, num_layers))

    assert out.shape == (batch, 2 * K, dim + 1), out.shape
    max_err = float(jnp.max(jnp.abs(out - ref)))
    assert jnp.allclose(out, ref, atol=1e-4, rtol=1e-4), max_err

    # bf16 MXU-operand path (v6e/v7x perf recommendation) — smoke check only,
    # with the correspondingly looser tolerance the review mentioned.
    fwd_bf16 = jax.jit(functools.partial(nmp_qem_projection_forward,
                                         dim=dim, num_layers=num_layers,
                                         matmul_dtype=jnp.bfloat16))
    out_bf16 = jax.block_until_ready(fwd_bf16(query, relation, params))
    bf16_err = float(jnp.max(jnp.abs(out_bf16 - ref)))
    assert bf16_err < 0.15, bf16_err

    print("KERNEL_OK")
</pallas_src>

<mosaic_0001>
module attributes {stable_mosaic.version = 11 : i64} {
  func.func @kernel(%arg0: i32, %arg1: memref<1x16x256xf32, #tpu.memory_space<vmem>>, %arg2: memref<2x16x16xf32, #tpu.memory_space<vmem>>, %arg3: memref<2x16x1xf32, #tpu.memory_space<vmem>>, %arg4: memref<16x16xf32, #tpu.memory_space<vmem>>, %arg5: memref<16x1xf32, #tpu.memory_space<vmem>>, %arg6: memref<1x16x256xf32, #tpu.memory_space<vmem>>) attributes {dimension_semantics = [#tpu.dimension_semantics<parallel>], iteration_bounds = array<i64: 2>, scalar_prefetch = 0 : i64, scratch_operands = 0 : i64, tpu.core_type = #tpu.core_type<tc>, window_params = [{transform_indices = @transform_0, window_bounds = array<i64: 1, 16, 256>}, {pipeline_mode = #tpu.pipeline_mode<synchronous>, transform_indices = @transform_1, window_bounds = array<i64: 2, 16, 16>}, {pipeline_mode = #tpu.pipeline_mode<synchronous>, transform_indices = @transform_2, window_bounds = array<i64: 2, 16, 1>}, {pipeline_mode = #tpu.pipeline_mode<synchronous>, transform_indices = @transform_3, window_bounds = array<i64: 16, 16>}, {pipeline_mode = #tpu.pipeline_mode<synchronous>, transform_indices = @transform_4, window_bounds = array<i64: 16, 1>}, {transform_indices = @transform_5, window_bounds = array<i64: 1, 16, 256>}]} {
    %c0 = arith.constant 0 : index
    %c0_0 = arith.constant 0 : index
    %c0_1 = arith.constant 0 : index
    %0 = vector.load %arg1[%c0, %c0_0, %c0_1] : memref<1x16x256xf32, #tpu.memory_space<vmem>>, vector<1x16x256xf32>
    %1 = vector.shape_cast %0 : vector<1x16x256xf32> to vector<16x256xf32>
    %c0_2 = arith.constant 0 : index
    %c0_3 = arith.constant 0 : index
    %c0_4 = arith.constant 0 : index
    %2 = vector.load %arg2[%c0_2, %c0_3, %c0_4] : memref<2x16x16xf32, #tpu.memory_space<vmem>>, vector<1x16x16xf32>
    %3 = vector.shape_cast %2 : vector<1x16x16xf32> to vector<16x16xf32>
    %c0_5 = arith.constant 0 : index
    %c0_6 = arith.constant 0 : index
    %c0_7 = arith.constant 0 : index
    %4 = vector.load %arg3[%c0_5, %c0_6, %c0_7] : memref<2x16x1xf32, #tpu.memory_space<vmem>>, vector<1x16x1xf32>
    %5 = vector.shape_cast %4 : vector<1x16x1xf32> to vector<16x1xf32>
    %cst = arith.constant dense<0.000000e+00> : vector<16x256xf32>
    %6 = tpu.matmul %3, %1, %cst {dimension_numbers = #tpu.dot_dimension_numbers<[1], [0], [0], [1], [0, 0, 1, 1], [], []>} : vector<16x16xf32>, vector<16x256xf32>, vector<16x256xf32> -> vector<16x256xf32>
    %7 = vector.broadcast %5 : vector<16x1xf32> to vector<16x256xf32>
    %8 = arith.addf %6, %7 : vector<16x256xf32>
    %cst_8 = arith.constant 0.000000e+00 : f32
    %9 = vector.broadcast %cst_8 : f32 to vector<16x256xf32>
    %10 = arith.maximumf %8, %9 : vector<16x256xf32>
    %c1 = arith.constant 1 : index
    %c0_9 = arith.constant 0 : index
    %c0_10 = arith.constant 0 : index
    %11 = vector.load %arg2[%c1, %c0_9, %c0_10] : memref<2x16x16xf32, #tpu.memory_space<vmem>>, vector<1x16x16xf32>
    %12 = vector.shape_cast %11 : vector<1x16x16xf32> to vector<16x16xf32>
    %c1_11 = arith.constant 1 : index
    %c0_12 = arith.constant 0 : index
    %c0_13 = arith.constant 0 : index
    %13 = vector.load %arg3[%c1_11, %c0_12, %c0_13] : memref<2x16x1xf32, #tpu.memory_space<vmem>>, vector<1x16x1xf32>
    %14 = vector.shape_cast %13 : vector<1x16x1xf32> to vector<16x1xf32>
    %cst_14 = arith.constant dense<0.000000e+00> : vector<16x256xf32>
    %15 = tpu.matmul %12, %10, %cst_14 {dimension_numbers = #tpu.dot_dimension_numbers<[1], [0], [0], [1], [0, 0, 1, 1], [], []>} : vector<16x16xf32>, vector<16x256xf32>, vector<16x256xf32> -> vector<16x256xf32>
    %16 = vector.broadcast %14 : vector<16x1xf32> to vector<16x256xf32>
    %17 = arith.addf %15, %16 : vector<16x256xf32>
    %cst_15 = arith.constant 0.000000e+00 : f32
    %18 = vector.broadcast %cst_15 : f32 to vector<16x256xf32>
    %19 = arith.maximumf %17, %18 : vector<16x256xf32>
    %c0_16 = arith.constant 0 : index
    %c0_17 = arith.constant 0 : index
    %20 = vector.load %arg4[%c0_16, %c0_17] : memref<16x16xf32, #tpu.memory_space<vmem>>, vector<16x16xf32>
    %c0_18 = arith.constant 0 : index
    %c0_19 = arith.constant 0 : index
    %21 = vector.load %arg5[%c0_18, %c0_19] : memref<16x1xf32, #tpu.memory_space<vmem>>, vector<16x1xf32>
    %cst_20 = arith.constant dense<0.000000e+00> : vector<16x256xf32>
    %22 = tpu.matmul %20, %19, %cst_20 {dimension_numbers = #tpu.dot_dimension_numbers<[1], [0], [0], [1], [0, 0, 1, 1], [], []>} : vector<16x16xf32>, vector<16x256xf32>, vector<16x256xf32> -> vector<16x256xf32>
    %23 = vector.broadcast %21 : vector<16x1xf32> to vector<16x256xf32>
    %24 = arith.addf %22, %23 : vector<16x256xf32>
    %25 = vector.extract_strided_slice %24 {offsets = [0, 0], sizes = [16, 128], strides = [1, 1]} : vector<16x256xf32> to vector<16x128xf32>
    %26 = vector.extract_strided_slice %24 {offsets = [0, 128], sizes = [16, 128], strides = [1, 1]} : vector<16x256xf32> to vector<16x128xf32>
    %cst_21 = arith.constant 0.000000e+00 : f32
    %27 = vector.broadcast %cst_21 : f32 to vector<16x128xf32>
    %28 = arith.maximumf %26, %27 : vector<16x128xf32>
    %29 = tpu.concatenate %25, %28 in 1 : vector<16x128xf32>, vector<16x128xf32> -> vector<16x256xf32>
    %c0_22 = arith.constant 0 : index
    %c0_23 = arith.constant 0 : index
    %c0_24 = arith.constant 0 : index
    %30 = vector.load %arg6[%c0_22, %c0_23, %c0_24] : memref<1x16x256xf32, #tpu.memory_space<vmem>>, vector<1x16x256xf32>
    %31 = vector.shape_cast %30 : vector<1x16x256xf32> to vector<16x256xf32>
    %32 = vector.shape_cast %29 : vector<16x256xf32> to vector<1x16x256xf32>
    tpu.vector_store %arg6[%c0_22, %c0_23, %c0_24], %32 {strides = array<i32>} : memref<1x16x256xf32, #tpu.memory_space<vmem>>, vector<1x16x256xf32>,
    %33 = vector.extract_strided_slice %24 {offsets = [15, 0], sizes = [1, 128], strides = [1, 1]} : vector<16x256xf32> to vector<1x128xf32>
    %34 = vector.extract_strided_slice %33 {offsets = [0, 0], sizes = [1, 16], strides = [1, 1]} : vector<1x128xf32> to vector<1x16xf32>
    %35 = vector.extract_strided_slice %33 {offsets = [0, 16], sizes = [1, 16], strides = [1, 1]} : vector<1x128xf32> to vector<1x16xf32>
    %36 = vector.extract_strided_slice %33 {offsets = [0, 32], sizes = [1, 16], strides = [1, 1]} : vector<1x128xf32> to vector<1x16xf32>
    %37 = vector.extract_strided_slice %33 {offsets = [0, 48], sizes = [1, 16], strides = [1, 1]} : vector<1x128xf32> to vector<1x16xf32>
    %38 = vector.extract_strided_slice %33 {offsets = [0, 64], sizes = [1, 16], strides = [1, 1]} : vector<1x128xf32> to vector<1x16xf32>
    %39 = vector.extract_strided_slice %33 {offsets = [0, 80], sizes = [1, 16], strides = [1, 1]} : vector<1x128xf32> to vector<1x16xf32>
    %40 = vector.extract_strided_slice %33 {offsets = [0, 96], sizes = [1, 16], strides = [1, 1]} : vector<1x128xf32> to vector<1x16xf32>
    %41 = vector.extract_strided_slice %33 {offsets = [0, 112], sizes = [1, 16], strides = [1, 1]} : vector<1x128xf32> to vector<1x16xf32>
    %42 = arith.maximumf %34, %35 : vector<1x16xf32>
    %43 = arith.maximumf %42, %36 : vector<1x16xf32>
    %44 = arith.maximumf %43, %37 : vector<1x16xf32>
    %45 = arith.maximumf %44, %38 : vector<1x16xf32>
    %46 = arith.maximumf %45, %39 : vector<1x16xf32>
    %47 = arith.maximumf %46, %40 : vector<1x16xf32>
    %48 = arith.maximumf %47, %41 : vector<1x16xf32>
    %49 = arith.subf %34, %48 : vector<1x16xf32>
    %50 = math.exp %49 : vector<1x16xf32>
    %51 = arith.subf %35, %48 : vector<1x16xf32>
    %52 = math.exp %51 : vector<1x16xf32>
    %53 = arith.subf %36, %48 : vector<1x16xf32>
    %54 = math.exp %53 : vector<1x16xf32>
    %55 = arith.subf %37, %48 : vector<1x16xf32>
    %56 = math.exp %55 : vector<1x16xf32>
    %57 = arith.subf %38, %48 : vector<1x16xf32>
    %58 = math.exp %57 : vector<1x16xf32>
    %59 = arith.subf %39, %48 : vector<1x16xf32>
    %60 = math.exp %59 : vector<1x16xf32>
    %61 = arith.subf %40, %48 : vector<1x16xf32>
    %62 = math.exp %61 : vector<1x16xf32>
    %63 = arith.subf %41, %48 : vector<1x16xf32>
    %64 = math.exp %63 : vector<1x16xf32>
    %65 = arith.addf %50, %52 : vector<1x16xf32>
    %66 = arith.addf %65, %54 : vector<1x16xf32>
    %67 = arith.addf %66, %56 : vector<1x16xf32>
    %68 = arith.addf %67, %58 : vector<1x16xf32>
    %69 = arith.addf %68, %60 : vector<1x16xf32>
    %70 = arith.addf %69, %62 : vector<1x16xf32>
    %71 = arith.addf %70, %64 : vector<1x16xf32>
    %72 = tpu.reciprocal %71 : vector<1x16xf32> -> vector<1x16xf32>
    %73 = arith.mulf %50, %72 : vector<1x16xf32>
    %74 = arith.mulf %52, %72 : vector<1x16xf32>
    %75 = arith.mulf %54, %72 : vector<1x16xf32>
    %76 = arith.mulf %56, %72 : vector<1x16xf32>
    %77 = arith.mulf %58, %72 : vector<1x16xf32>
    %78 = arith.mulf %60, %72 : vector<1x16xf32>
    %79 = arith.mulf %62, %72 : vector<1x16xf32>
    %80 = arith.mulf %64, %72 : vector<1x16xf32>
    %81 = tpu.concatenate %73, %74, %75, %76, %77, %78, %79, %80 in 1 : vector<1x16xf32>, vector<1x16xf32>, vector<1x16xf32>, vector<1x16xf32>, vector<1x16xf32>, vector<1x16xf32>, vector<1x16xf32>, vector<1x16xf32> -> vector<1x128xf32>
    %c0_25 = arith.constant 0 : index
    %c15 = arith.constant 15 : index
    %c0_26 = arith.constant 0 : index
    %82 = vector.load %arg6[%c0_25, %c15, %c0_26] : memref<1x16x256xf32, #tpu.memory_space<vmem>>, vector<1x1x128xf32>
    %83 = vector.shape_cast %82 : vector<1x1x128xf32> to vector<1x128xf32>
    %84 = vector.shape_cast %81 : vector<1x128xf32> to vector<1x1x128xf32>
    tpu.vector_store %arg6[%c0_25, %c15, %c0_26], %84 {strides = array<i32>} : memref<1x16x256xf32, #tpu.memory_space<vmem>>, vector<1x1x128xf32>,
    return
  }
  func.func @transform_0(%arg0: i32) -> (i32, i32, i32) {
    %c0_i32 = arith.constant 0 : i32
    %c0_i32_0 = arith.constant 0 : i32
    %c0_i32_1 = arith.constant 0 : i32
    return %arg0, %c0_i32, %c0_i32_0 : i32, i32, i32
  }
  func.func @transform_1(%arg0: i32) -> (i32, i32, i32) {
    %c0_i32 = arith.constant 0 : i32
    %c0_i32_0 = arith.constant 0 : i32
    %c0_i32_1 = arith.constant 0 : i32
    %c0_i32_2 = arith.constant 0 : i32
    return %c0_i32, %c0_i32_0, %c0_i32_1 : i32, i32, i32
  }
  func.func @transform_2(%arg0: i32) -> (i32, i32, i32) {
    %c0_i32 = arith.constant 0 : i32
    %c0_i32_0 = arith.constant 0 : i32
    %c0_i32_1 = arith.constant 0 : i32
    %c0_i32_2 = arith.constant 0 : i32
    return %c0_i32, %c0_i32_0, %c0_i32_1 : i32, i32, i32
  }
  func.func @transform_3(%arg0: i32) -> (i32, i32) {
    %c0_i32 = arith.constant 0 : i32
    %c0_i32_0 = arith.constant 0 : i32
    %c0_i32_1 = arith.constant 0 : i32
    return %c0_i32, %c0_i32_0 : i32, i32
  }
  func.func @transform_4(%arg0: i32) -> (i32, i32) {
    %c0_i32 = arith.constant 0 : i32
    %c0_i32_0 = arith.constant 0 : i32
    %c0_i32_1 = arith.constant 0 : i32
    return %c0_i32, %c0_i32_0 : i32, i32
  }
  func.func @transform_5(%arg0: i32) -> (i32, i32, i32) {
    %c0_i32 = arith.constant 0 : i32
    %c0_i32_0 = arith.constant 0 : i32
    %c0_i32_1 = arith.constant 0 : i32
    return %arg0, %c0_i32, %c0_i32_0 : i32, i32, i32
  }
}

</mosaic_0001>

<llo_original>
// kernel: nmp_qem_projection_forward.1
$region0: #{nmp_qem_projection_forward.1}
  #allocation0 [shape = 'u32[]', space=smem, size = 0x4, offset = 0x4, fixed_abs, tag = 'smem constant byte address 0x4 - core index']
  #allocation1 [shape = 'u32[72,128]{1,0:T(1,128)}', space=vmem, size = 0x9000, scoped, tag = 'internal scratch']
  %s0 = inlined_call_operand.vmem [shape: f32[2,16,256], index: 0, kind: input, shape index: {}]
  %s1 = inlined_call_operand.vmem [shape: f32[2,16,16], index: 1, kind: input, shape index: {}]
  %s2 = inlined_call_operand.vmem [shape: f32[2,16,1], index: 2, kind: input, shape index: {}]
  %s3 = inlined_call_operand.vmem [shape: f32[16,16], index: 3, kind: input, shape index: {}]
  %s4 = inlined_call_operand.vmem [shape: f32[16,1], index: 4, kind: input, shape index: {}]
  %s5 = inlined_call_operand.vmem [shape: f32[2,16,256], index: 5, kind: output, shape index: {}]
  %s6 = sld [smem:[#allocation0]]
  $region53: #{nmp_qem_projection_forward.1} parent=0
    _
  %s8 = ssub.s32 1, %s6
  %s9 = scalar_select 0, %s8, %s6
  loop: start=0, step=1, limit=4
  $region2: #{nmp_qem_projection_forward.1} parent=0 // loop_pre_header
    _
  $region3: #{nmp_qem_projection_forward.1} parent=0 // loop_header
    %s11 = sphi 0, %s15
    %p12 = scmp.ge.s32.totalorder %s11, 4
    %s21 = sphi 0, %s23
    %s24 = sphi 0, %s21
    %s25 = sphi 0, %s24
    %s41 = sphi 0, %s25
    %s45 = sphi 0, %s45
    %s47 = sphi 0, %s45
    %s48 = sphi 0, %s47
    %s62 = sphi 0, %s48
    %s66 = sphi 0, %s66
    %s68 = sphi 0, %s66
    %s69 = sphi 0, %s68
    %s83 = sphi 0, %s69
    %s87 = sphi 0, %s87
    %s89 = sphi 0, %s87
    %s90 = sphi 0, %s89
    %s104 = sphi 0, %s90
    %s108 = sphi 0, %s108
    %s110 = sphi 0, %s108
    %s111 = sphi 0, %s110
    %s125 = sphi 0, %s111
    %s131 = sphi 0, %s133
    %s134 = sphi 0, %s131
    %s135 = sphi 0, %s134
    %s151 = sphi 0, %s135
  $region4: #{nmp_qem_projection_forward.1} parent=0 // loop_header_branch
    %14 = sbr.rel (%p12) target = $region8
  $region5: #{nmp_qem_projection_forward.1} parent=0 // loop_body
    %s16 = ssub.s32 %s11, 1
    %s17 = ssub.s32 %s11, 2
    %s18 = sadd.s32 %s11, 1
    %s19 = ssub.s32 %s11, %s18
    %p20 = scmp.eq.s32.totalorder %s19, 0
    %s22 = sadd.s32 %s21, 1
    %s23 = scalar_select %p20, %s21, %s22
    %p26 = pneg %p20
    %p27 = scmp.eq.s32.totalorder %s11, 1
    %p28 = por %p26, %p27
    %p29 = scmp.ne.s32.totalorder %s21, %s24
    %p30 = scmp.eq.s32.totalorder %s11, 0
    %p31 = por %p29, %p30
    %p32 = scmp.ne.s32.totalorder %s21, %s24
    %p33 = scmp.eq.s32.totalorder %s16, 1
    %p34 = por %p32, %p33
    %p35 = scmp.ne.s32.totalorder %s24, %s25
    %p36 = scmp.eq.s32.totalorder %s16, 0
    %p37 = por %p35, %p36
    %p38 = scmp.ne.s32.totalorder %s24, %s25
    %p39 = scmp.eq.s32.totalorder %s17, 1
    %p40 = por %p38, %p39
    %p42 = scmp.ne.s32.totalorder %s25, %s41
    %p43 = scmp.eq.s32.totalorder %s17, 0
    %p44 = por %p42, %p43
    %s46 = sadd.s32 %s45, 1
    %p49 = scmp.eq.s32.totalorder %s11, 1
    %p50 = scmp.ne.s32.totalorder %s45, %s47
    %p51 = scmp.eq.s32.totalorder %s11, 0
    %p52 = por %p50, %p51
    %p53 = scmp.ne.s32.totalorder %s45, %s47
    %p54 = scmp.eq.s32.totalorder %s16, 1
    %p55 = por %p53, %p54
    %p56 = scmp.ne.s32.totalorder %s47, %s48
    %p57 = scmp.eq.s32.totalorder %s16, 0
    %p58 = por %p56, %p57
    %p59 = scmp.ne.s32.totalorder %s47, %s48
    %p60 = scmp.eq.s32.totalorder %s17, 1
    %p61 = por %p59, %p60
    %p63 = scmp.ne.s32.totalorder %s48, %s62
    %p64 = scmp.eq.s32.totalorder %s17, 0
    %p65 = por %p63, %p64
    %s67 = sadd.s32 %s66, 1
    %p70 = scmp.eq.s32.totalorder %s11, 1
    %p71 = scmp.ne.s32.totalorder %s66, %s68
    %p72 = scmp.eq.s32.totalorder %s11, 0
    %p73 = por %p71, %p72
    %p74 = scmp.ne.s32.totalorder %s66, %s68
    %p75 = scmp.eq.s32.totalorder %s16, 1
    %p76 = por %p74, %p75
    %p77 = scmp.ne.s32.totalorder %s68, %s69
    %p78 = scmp.eq.s32.totalorder %s16, 0
    %p79 = por %p77, %p78
    %p80 = scmp.ne.s32.totalorder %s68, %s69
    %p81 = scmp.eq.s32.totalorder %s17, 1
    %p82 = por %p80, %p81
    %p84 = scmp.ne.s32.totalorder %s69, %s83
    %p85 = scmp.eq.s32.totalorder %s17, 0
    %p86 = por %p84, %p85
    %s88 = sadd.s32 %s87, 1
    %p91 = scmp.eq.s32.totalorder %s11, 1
    %p92 = scmp.ne.s32.totalorder %s87, %s89
    %p93 = scmp.eq.s32.totalorder %s11, 0
    %p94 = por %p92, %p93
    %p95 = scmp.ne.s32.totalorder %s87, %s89
    %p96 = scmp.eq.s32.totalorder %s16, 1
    %p97 = por %p95, %p96
    %p98 = scmp.ne.s32.totalorder %s89, %s90
    %p99 = scmp.eq.s32.totalorder %s16, 0
    %p100 = por %p98, %p99
    %p101 = scmp.ne.s32.totalorder %s89, %s90
    %p102 = scmp.eq.s32.totalorder %s17, 1
    %p103 = por %p101, %p102
    %p105 = scmp.ne.s32.totalorder %s90, %s104
    %p106 = scmp.eq.s32.totalorder %s17, 0
    %p107 = por %p105, %p106
    %s109 = sadd.s32 %s108, 1
    %p112 = scmp.eq.s32.totalorder %s11, 1
    %p113 = scmp.ne.s32.totalorder %s108, %s110
    %p114 = scmp.eq.s32.totalorder %s11, 0
    %p115 = por %p113, %p114
    %p116 = scmp.ne.s32.totalorder %s108, %s110
    %p117 = scmp.eq.s32.totalorder %s16, 1
    %p118 = por %p116, %p117
    %p119 = scmp.ne.s32.totalorder %s110, %s111
    %p120 = scmp.eq.s32.totalorder %s16, 0
    %p121 = por %p119, %p120
    %p122 = scmp.ne.s32.totalorder %s110, %s111
    %p123 = scmp.eq.s32.totalorder %s17, 1
    %p124 = por %p122, %p123
    %p126 = scmp.ne.s32.totalorder %s111, %s125
    %p127 = scmp.eq.s32.totalorder %s17, 0
    %p128 = por %p126, %p127
    %s129 = ssub.s32 %s11, %s18
    %p130 = scmp.eq.s32.totalorder %s129, 0
    %s132 = sadd.s32 %s131, 1
    %s133 = scalar_select %p130, %s131, %s132
    %p136 = pneg %p130
    %p137 = scmp.eq.s32.totalorder %s11, 1
    %p138 = por %p136, %p137
    %p139 = scmp.ne.s32.totalorder %s131, %s134
    %p140 = scmp.eq.s32.totalorder %s11, 0
    %p141 = por %p139, %p140
    %p142 = scmp.ne.s32.totalorder %s131, %s134
    %p143 = scmp.eq.s32.totalorder %s16, 1
    %p144 = por %p142, %p143
    %p145 = scmp.ne.s32.totalorder %s134, %s135
    %p146 = scmp.eq.s32.totalorder %s16, 0
    %p147 = por %p145, %p146
    %p148 = scmp.ne.s32.totalorder %s134, %s135
    %p149 = scmp.eq.s32.totalorder %s17, 1
    %p150 = por %p148, %p149
    %p152 = scmp.ne.s32.totalorder %s135, %s151
    %p153 = scmp.eq.s32.totalorder %s17, 0
    %p154 = por %p152, %p153
    %p155 = scmp.le.s32.totalorder 1, %s11
    %p156 = scmp.lt.s32.totalorder %s11, 3
    %p157 = pnand %p155, %p156
    %p158 = pneg %p157
    // Predicated region
    $region9: #{nmp_qem_projection_forward.1} parent=5 // pred_check
      _
    $region10: #{nmp_qem_projection_forward.1} parent=5 // pred_check_branch
      %160 = sbr.rel (%p157) target = $region12
    $region11: #{nmp_qem_projection_forward.1} parent=5 // pred_region
      %s161 = ssub.s32 %s11, 1
      // Predicated region
      $region13: #{nmp_qem_projection_forward.1} parent=11 // pred_check
        %p162 = pneg %p58
      $region14: #{nmp_qem_projection_forward.1} parent=11 // pred_check_branch
        %164 = sbr.rel (%p162) target = $region16
      $region15: #{nmp_qem_projection_forward.1} parent=11 // pred_region
        _
      $region16: #{nmp_qem_projection_forward.1} parent=11 // pred_fallthru
        _
      // Predicated region
      $region17: #{nmp_qem_projection_forward.1} parent=11 // pred_check
        %p165 = pneg %p79
      $region18: #{nmp_qem_projection_forward.1} parent=11 // pred_check_branch
        %167 = sbr.rel (%p165) target = $region20
      $region19: #{nmp_qem_projection_forward.1} parent=11 // pred_region
        _
      $region20: #{nmp_qem_projection_forward.1} parent=11 // pred_fallthru
        _
      // Predicated region
      $region21: #{nmp_qem_projection_forward.1} parent=11 // pred_check
        %p168 = pneg %p100
      $region22: #{nmp_qem_projection_forward.1} parent=11 // pred_check_branch
        %170 = sbr.rel (%p168) target = $region24
      $region23: #{nmp_qem_projection_forward.1} parent=11 // pred_region
        _
      $region24: #{nmp_qem_projection_forward.1} parent=11 // pred_fallthru
        _
      // Predicated region
      $region25: #{nmp_qem_projection_forward.1} parent=11 // pred_check
        %p171 = pneg %p121
      $region26: #{nmp_qem_projection_forward.1} parent=11 // pred_check_branch
        %173 = sbr.rel (%p171) target = $region28
      $region27: #{nmp_qem_projection_forward.1} parent=11 // pred_region
        _
      $region28: #{nmp_qem_projection_forward.1} parent=11 // pred_fallthru
        _
    $region12: #{nmp_qem_projection_forward.1} parent=5 // pred_fallthru
      _
    %p174 = scmp.lt.s32.totalorder %s11, 2
    // Predicated region
    $region29: #{nmp_qem_projection_forward.1} parent=5 // pred_check
      %p175 = pneg %p174
    $region30: #{nmp_qem_projection_forward.1} parent=5 // pred_check_branch
      %177 = sbr.rel (%p175) target = $region32
    $region31: #{nmp_qem_projection_forward.1} parent=5 // pred_region
      // Predicated region
      $region33: #{nmp_qem_projection_forward.1} parent=31 // pred_check
        %p178 = pneg %p31
      $region34: #{nmp_qem_projection_forward.1} parent=31 // pred_check_branch
        %180 = sbr.rel (%p178) target = $region36
      $region35: #{nmp_qem_projection_forward.1} parent=31 // pred_region
        %p181 = scmp.lt.s32.totalorder %s11, 1
        %s182 = scalar_select %p181, %s11, 1
        %s183 = smul.addr %s182, 4
        %s184 = smul.addr %s183, 8
        %s185 = scalar_lea.vmem %s0, %s184
      $region36: #{nmp_qem_projection_forward.1} parent=31 // pred_fallthru
        _
    $region32: #{nmp_qem_projection_forward.1} parent=5 // pred_fallthru
      _
    %p186 = scmp.le.s32.totalorder 1, %s11
    %p187 = scmp.lt.s32.totalorder %s11, 3
    %p188 = pnand %p186, %p187
    %p189 = pneg %p188
    // Predicated region
    $region37: #{nmp_qem_projection_forward.1} parent=5 // pred_check
      _
    $region38: #{nmp_qem_projection_forward.1} parent=5 // pred_check_branch
      %191 = sbr.rel (%p188) target = $region40
    $region39: #{nmp_qem_projection_forward.1} parent=5 // pred_region
      %s192 = ssub.s32 %s11, 1
      %p193 = scmp.lt.s32.totalorder %s16, 1
      %s194 = scalar_select %p193, %s16, 1
      %s195 = smul.addr %s194, 4
      %s196 = smul.addr %s195, 8
      %s197 = scalar_lea.vmem %s0, %s196
      %p198 = pneg %p37
      %p199 = pneg %p34
      %p200 = pneg %p58
      %p201 = pneg %p55
      %p202 = pneg %p79
      %p203 = pneg %p76
      %p204 = pneg %p100
      %p205 = pneg %p97
      %p206 = pneg %p121
      %p207 = pneg %p118
      %p208 = pneg %p147
      %p209 = pneg %p144
      %p210 = scmp.lt.s32.totalorder %s16, 1
      %s211 = scalar_select %p210, %s16, 1
      %s212 = smul.addr %s211, 4
      %s213 = smul.addr %s212, 8
      %s214 = scalar_lea.vmem %s5, %s213
      %p215 = scmp.lt.s32.totalorder %s16, 1
      %s216 = scalar_select %p215, %s16, 1
      %s217 = smul.addr %s216, 4
      %s218 = smul.addr %s217, 8
      %s219 = scalar_lea.vmem %s0, %s218
      %p220 = scmp.lt.s32.totalorder %s16, 1
      %s221 = scalar_select %p220, %s16, 1
      %s222 = smul.addr %s221, 4
      %s223 = smul.addr %s222, 8
      %s224 = scalar_lea.vmem %s5, %s223
      %v225 = vld [vmem:[%s219] sm:$0xff]
      %v226 = vld [vmem:[%s219 + $0x8] sm:$0xff]
      %v227 = vld [vmem:[%s219 + $0x10] sm:$0xff]
      %v228 = vld [vmem:[%s219 + $0x18] sm:$0xff]
      %v229 = vld [vmem:[%s1] sm:$0xff]
      %v230 = vld [vmem:[%s1 + $0x8] sm:$0xff]
      %v231 = vld [vmem:[%s2] sm:$0xff]
      %v232 = vld [vmem:[%s2 + $0x8] sm:$0xff]
      %234 = vset.pattern.permute.xlu0 0
      %235 = vperm.xlu0 %234, %v231
      %v236 = vpop.permute.xlu0 %235
      %239 = vset.pattern.permute.xlu0 0
      %240 = vperm.xlu0 %239, %v232
      %v241 = vpop.permute.xlu0 %240
      %vm243 = vcmask 130048
      %v245 = vsel %vm243, %v229, 0
      %v248 = vsel %vm243, %v230, 0
      %250 = vmatpush.msra.mxu0 0.0
      %251 = vmatpush.msra.mxu0 0.0
      %252 = vmatpush.msra.mxu0 0.0
      %253 = vmatpush.msra.mxu0 0.0
      %254 = vmatpush.msra.mxu0 0.0
      %255 = vmatpush.msra.mxu0 0.0
      %256 = vmatpush.msra.mxu0 0.0
      %257 = vmatpush.msra.mxu0 0.0
      %258 = vmatpush.msra.mxu0 0.0
      %259 = vmatpush.msra.mxu0 0.0
      %260 = vmatpush.msra.mxu0 0.0
      %261 = vmatpush.msra.mxu0 0.0
      %262 = vmatpush.msra.mxu0 0.0
      %263 = vmatpush.msra.mxu0 0.0
      %264 = vmatpush.msra.mxu0 %v227
      %265 = vmatpush.msra.mxu0 %v225
      %266 = vmatmul.f32.gmra.mxu0 %v245
      %v267 = vpop.f32.mrf.mxu0
      %v268 = vadd.f32 %v236, %v267
      %269 = vmatmul.f32.gmra.mxu0 %v248
      %v270 = vpop.f32.mrf.mxu0
      %v271 = vadd.f32 %v241, %v270
      %272 = vdwg.mxu0
      %273 = vmatpush.msra.mxu0 0.0
      %274 = vmatpush.msra.mxu0 0.0
      %275 = vmatpush.msra.mxu0 0.0
      %276 = vmatpush.msra.mxu0 0.0
      %277 = vmatpush.msra.mxu0 0.0
      %278 = vmatpush.msra.mxu0 0.0
      %279 = vmatpush.msra.mxu0 0.0
      %280 = vmatpush.msra.mxu0 0.0
      %281 = vmatpush.msra.mxu0 0.0
      %282 = vmatpush.msra.mxu0 0.0
      %283 = vmatpush.msra.mxu0 0.0
      %284 = vmatpush.msra.mxu0 0.0
      %285 = vmatpush.msra.mxu0 0.0
      %286 = vmatpush.msra.mxu0 0.0
      %287 = vmatpush.msra.mxu0 %v228
      %288 = vmatpush.msra.mxu0 %v226
      %289 = vmatmul.f32.gmra.mxu0 %v245
      %v290 = vpop.f32.mrf.mxu0
      %v291 = vadd.f32 %v236, %v290
      %292 = vmatmul.f32.gmra.mxu0 %v248
      %v293 = vpop.f32.mrf.mxu0
      %v294 = vadd.f32 %v241, %v293
      %295 = vdwg.mxu0
      %v296 = vmax.f32 %v268, 0.0
      %v297 = vmax.f32 %v291, 0.0
      %v298 = vmax.f32 %v271, 0.0
      %v299 = vmax.f32 %v294, 0.0
      %s300 = scalar_lea.vmem %s1, 16
      %v301 = vld [vmem:[%s300] sm:$0xff]
      %v302 = vld [vmem:[%s300 + $0x8] sm:$0xff]
      %s303 = scalar_lea.vmem %s2, 16
      %v304 = vld [vmem:[%s303] sm:$0xff]
      %v305 = vld [vmem:[%s303 + $0x8] sm:$0xff]
      %307 = vset.pattern.permute.xlu0 0
      %308 = vperm.xlu0 %307, %v304
      %v309 = vpop.permute.xlu0 %308
      %312 = vset.pattern.permute.xlu0 0
      %313 = vperm.xlu0 %312, %v305
      %v314 = vpop.permute.xlu0 %313
      %v317 = vsel %vm243, %v301, 0
      %v320 = vsel %vm243, %v302, 0
      %322 = vmatpush.msra.mxu0 0.0
      %323 = vmatpush.msra.mxu0 0.0
      %324 = vmatpush.msra.mxu0 0.0
      %325 = vmatpush.msra.mxu0 0.0
      %326 = vmatpush.msra.mxu0 0.0
      %327 = vmatpush.msra.mxu0 0.0
      %328 = vmatpush.msra.mxu0 0.0
      %329 = vmatpush.msra.mxu0 0.0
      %330 = vmatpush.msra.mxu0 0.0
      %331 = vmatpush.msra.mxu0 0.0
      %332 = vmatpush.msra.mxu0 0.0
      %333 = vmatpush.msra.mxu0 0.0
      %334 = vmatpush.msra.mxu0 0.0
      %335 = vmatpush.msra.mxu0 0.0
      %336 = vmatpush.msra.mxu0 %v298
      %337 = vmatpush.msra.mxu0 %v296
      %338 = vmatmul.f32.gmra.mxu0 %v317
      %v339 = vpop.f32.mrf.mxu0
      %v340 = vadd.f32 %v309, %v339
      %341 = vmatmul.f32.gmra.mxu0 %v320
      %v342 = vpop.f32.mrf.mxu0
      %v343 = vadd.f32 %v314, %v342
      %344 = vdwg.mxu0
      %345 = vmatpush.msra.mxu0 0.0
      %346 = vmatpush.msra.mxu0 0.0
      %347 = vmatpush.msra.mxu0 0.0
      %348 = vmatpush.msra.mxu0 0.0
      %349 = vmatpush.msra.mxu0 0.0
      %350 = vmatpush.msra.mxu0 0.0
      %351 = vmatpush.msra.mxu0 0.0
      %352 = vmatpush.msra.mxu0 0.0
      %353 = vmatpush.msra.mxu0 0.0
      %354 = vmatpush.msra.mxu0 0.0
      %355 = vmatpush.msra.mxu0 0.0
      %356 = vmatpush.msra.mxu0 0.0
      %357 = vmatpush.msra.mxu0 0.0
      %358 = vmatpush.msra.mxu0 0.0
      %359 = vmatpush.msra.mxu0 %v299
      %360 = vmatpush.msra.mxu0 %v297
      %361 = vmatmul.f32.gmra.mxu0 %v317
      %v362 = vpop.f32.mrf.mxu0
      %v363 = vadd.f32 %v309, %v362
      %364 = vmatmul.f32.gmra.mxu0 %v320
      %v365 = vpop.f32.mrf.mxu0
      %v366 = vadd.f32 %v314, %v365
      %367 = vdwg.mxu0
      %v368 = vmax.f32 %v340, 0.0
      %v369 = vmax.f32 %v363, 0.0
      %v370 = vmax.f32 %v343, 0.0
      %v371 = vmax.f32 %v366, 0.0
      %v372 = vld [vmem:[%s3] sm:$0xff]
      %v373 = vld [vmem:[%s3 + $0x8] sm:$0xff]
      %v374 = vld [vmem:[%s4] sm:$0xff]
      %v375 = vld [vmem:[%s4 + $0x8] sm:$0xff]
      %377 = vset.pattern.permute.xlu0 0
      %378 = vperm.xlu0 %377, %v374
      %v379 = vpop.permute.xlu0 %378
      %382 = vset.pattern.permute.xlu0 0
      %383 = vperm.xlu0 %382, %v375
      %v384 = vpop.permute.xlu0 %383
      %v387 = vsel %vm243, %v372, 0
      %v390 = vsel %vm243, %v373, 0
      %392 = vmatpush.msra.mxu0 0.0
      %393 = vmatpush.msra.mxu0 0.0
      %394 = vmatpush.msra.mxu0 0.0
      %395 = vmatpush.msra.mxu0 0.0
      %396 = vmatpush.msra.mxu0 0.0
      %397 = vmatpush.msra.mxu0 0.0
      %398 = vmatpush.msra.mxu0 0.0
      %399 = vmatpush.msra.mxu0 0.0
      %400 = vmatpush.msra.mxu0 0.0
      %401 = vmatpush.msra.mxu0 0.0
      %402 = vmatpush.msra.mxu0 0.0
      %403 = vmatpush.msra.mxu0 0.0
      %404 = vmatpush.msra.mxu0 0.0
      %405 = vmatpush.msra.mxu0 0.0
      %406 = vmatpush.msra.mxu0 %v370
      %407 = vmatpush.msra.mxu0 %v368
      %408 = vmatmul.f32.gmra.mxu0 %v387
      %v409 = vpop.f32.mrf.mxu0
      %v410 = vadd.f32 %v379, %v409
      %411 = vmatmul.f32.gmra.mxu0 %v390
      %v412 = vpop.f32.mrf.mxu0
      %v413 = vadd.f32 %v384, %v412
      %414 = vdwg.mxu0
      %415 = vmatpush.msra.mxu0 0.0
      %416 = vmatpush.msra.mxu0 0.0
      %417 = vmatpush.msra.mxu0 0.0
      %418 = vmatpush.msra.mxu0 0.0
      %419 = vmatpush.msra.mxu0 0.0
      %420 = vmatpush.msra.mxu0 0.0
      %421 = vmatpush.msra.mxu0 0.0
      %422 = vmatpush.msra.mxu0 0.0
      %423 = vmatpush.msra.mxu0 0.0
      %424 = vmatpush.msra.mxu0 0.0
      %425 = vmatpush.msra.mxu0 0.0
      %426 = vmatpush.msra.mxu0 0.0
      %427 = vmatpush.msra.mxu0 0.0
      %428 = vmatpush.msra.mxu0 0.0
      %429 = vmatpush.msra.mxu0 %v371
      %430 = vmatpush.msra.mxu0 %v369
      %431 = vmatmul.f32.gmra.mxu0 %v387
      %v432 = vpop.f32.mrf.mxu0
      %v433 = vadd.f32 %v379, %v432
      %434 = vmatmul.f32.gmra.mxu0 %v390
      %v435 = vpop.f32.mrf.mxu0
      %v436 = vadd.f32 %v384, %v435
      %437 = vdwg.mxu0
      %v438 = vmax.f32 %v433, 0.0
      %v439 = vmax.f32 %v436, 0.0
      %440 = vst [vmem:[%s224] sm:$0xff] %v410
      %441 = vst [vmem:[%s224 + $0x8] sm:$0xff] %v438
      %442 = vst [vmem:[%s224 + $0x10] sm:$0xff] %v413
      %443 = vst [vmem:[%s224 + $0x18] sm:$0xff] %v439
      %445 = vrot.lane.b32.xlu0 %v413, 112
      %v446 = vpop.permute.xlu0 %445
      %v448 = vmax.f32 %v413, %v446
      %449 = vrot.lane.b32.xlu0 %v413, 96
      %v450 = vpop.permute.xlu0 %449
      %v452 = vmax.f32 %v448, %v450
      %453 = vrot.lane.b32.xlu0 %v413, 80
      %v454 = vpop.permute.xlu0 %453
      %v456 = vmax.f32 %v452, %v454
      %457 = vrot.lane.b32.xlu0 %v413, 64
      %v458 = vpop.permute.xlu0 %457
      %v460 = vmax.f32 %v456, %v458
      %461 = vrot.lane.b32.xlu0 %v413, 48
      %v462 = vpop.permute.xlu0 %461
      %v464 = vmax.f32 %v460, %v462
      %465 = vrot.lane.b32.xlu0 %v413, 32
      %v466 = vpop.permute.xlu0 %465
      %v468 = vmax.f32 %v464, %v466
      %469 = vrot.lane.b32.xlu0 %v413, 16
      %v470 = vpop.permute.xlu0 %469
      %v472 = vmax.f32 %v468, %v470
      %v473 = vsub.f32 %v413, %v472
      %v474 = vmul.f32 %v473, 1.442695
      %v475 = vpow.pop %v474
      %477 = vrot.lane.b32.xlu0 %v472, 16
      %v478 = vpop.permute.xlu0 %477
      %v480 = vsub.f32 %v413, %v478
      %v481 = vmul.f32 %v480, 1.442695
      %v482 = vpow.pop %v481
      %483 = vrot.lane.b32.xlu0 %v472, 32
      %v484 = vpop.permute.xlu0 %483
      %v486 = vsub.f32 %v413, %v484
      %v487 = vmul.f32 %v486, 1.442695
      %v488 = vpow.pop %v487
      %489 = vrot.lane.b32.xlu0 %v472, 48
      %v490 = vpop.permute.xlu0 %489
      %v492 = vsub.f32 %v413, %v490
      %v493 = vmul.f32 %v492, 1.442695
      %v494 = vpow.pop %v493
      %495 = vrot.lane.b32.xlu0 %v472, 64
      %v496 = vpop.permute.xlu0 %495
      %v498 = vsub.f32 %v413, %v496
      %v499 = vmul.f32 %v498, 1.442695
      %v500 = vpow.pop %v499
      %501 = vrot.lane.b32.xlu0 %v472, 80
      %v502 = vpop.permute.xlu0 %501
      %v504 = vsub.f32 %v413, %v502
      %v505 = vmul.f32 %v504, 1.442695
      %v506 = vpow.pop %v505
      %507 = vrot.lane.b32.xlu0 %v472, 96
      %v508 = vpop.permute.xlu0 %507
      %v510 = vsub.f32 %v413, %v508
      %v511 = vmul.f32 %v510, 1.442695
      %v512 = vpow.pop %v511
      %513 = vrot.lane.b32.xlu0 %v472, 112
      %v514 = vpop.permute.xlu0 %513
      %v516 = vsub.f32 %v413, %v514
      %v517 = vmul.f32 %v516, 1.442695
      %v518 = vpow.pop %v517
      %520 = vrot.lane.b32.xlu0 %v482, 112
      %v521 = vpop.permute.xlu0 %520
      %v523 = vadd.f32 %v475, %v521
      %525 = vrot.lane.b32.xlu0 %v488, 96
      %v526 = vpop.permute.xlu0 %525
      %v528 = vadd.f32 %v523, %v526
      %530 = vrot.lane.b32.xlu0 %v494, 80
      %v531 = vpop.permute.xlu0 %530
      %v533 = vadd.f32 %v528, %v531
      %535 = vrot.lane.b32.xlu0 %v500, 64
      %v536 = vpop.permute.xlu0 %535
      %v538 = vadd.f32 %v533, %v536
      %540 = vrot.lane.b32.xlu0 %v506, 48
      %v541 = vpop.permute.xlu0 %540
      %v543 = vadd.f32 %v538, %v541
      %545 = vrot.lane.b32.xlu0 %v512, 32
      %v546 = vpop.permute.xlu0 %545
      %v548 = vadd.f32 %v543, %v546
      %550 = vrot.lane.b32.xlu0 %v518, 16
      %v551 = vpop.permute.xlu0 %550
      %v553 = vadd.f32 %v548, %v551
      %v554 = vrcp.pop %v553
      %v555 = vmul.f32 %v553, %v554
      %v556 = vsub.f32 1.0, %v555
      %v557 = vmul.f32 %v554, %v556
      %v558 = vadd.f32 %v554, %v557
      %vm559 = vweird.f32 %v553
      %vm560 = vweird.f32 %v554
      %vm561 = vmor %vm559, %vm560
      %v562 = vsel %vm561, %v554, %v558
      %v563 = vand.u32 2147483647, %v553
      %vm564 = vcmp.eq.f32.partialorder %v563, 8.507059e+37
      %v565 = vand.u32 %v553, 2147483648
      %v566 = vor.u32 1.1754944e-38, %v565
      %v567 = vsel %vm564, %v566, %v562
      %v568 = vmul.f32 %v475, %v567
      %570 = vrot.lane.b32.xlu0 %v567, 16
      %v571 = vpop.permute.xlu0 %570
      %v573 = vmul.f32 %v482, %v571
      %574 = vrot.lane.b32.xlu0 %v567, 32
      %v575 = vpop.permute.xlu0 %574
      %v577 = vmul.f32 %v488, %v575
      %578 = vrot.lane.b32.xlu0 %v567, 48
      %v579 = vpop.permute.xlu0 %578
      %v581 = vmul.f32 %v494, %v579
      %582 = vrot.lane.b32.xlu0 %v567, 64
      %v583 = vpop.permute.xlu0 %582
      %v585 = vmul.f32 %v500, %v583
      %586 = vrot.lane.b32.xlu0 %v567, 80
      %v587 = vpop.permute.xlu0 %586
      %v589 = vmul.f32 %v506, %v587
      %590 = vrot.lane.b32.xlu0 %v567, 96
      %v591 = vpop.permute.xlu0 %590
      %v593 = vmul.f32 %v512, %v591
      %594 = vrot.lane.b32.xlu0 %v567, 112
      %v595 = vpop.permute.xlu0 %594
      %v597 = vmul.f32 %v518, %v595
      %v598 = vsel %vm243, %v568, %v573
      %vm599 = vcmask 261120
      %v600 = vsel %vm599, %v598, %v577
      %vm601 = vcmask 392192
      %v602 = vsel %vm601, %v600, %v581
      %vm603 = vcmask 523264
      %v604 = vsel %vm603, %v602, %v585
      %vm605 = vcmask 654336
      %v606 = vsel %vm605, %v604, %v589
      %vm607 = vcmask 785408
      %v608 = vsel %vm607, %v606, %v593
      %vm609 = vcmask 916480
      %v610 = vsel %vm609, %v608, %v597
      %v612 = vrot.slane %v610, 7
      %614 = vst [vmem:[%s224 + $0x17] sm:$0x1] %v612
      %p615 = scmp.lt.s32.totalorder %s16, 1
      %s616 = scalar_select %p615, %s16, 1
      %s617 = smul.addr %s616, 4
      %s618 = smul.addr %s617, 8
      %s619 = scalar_lea.vmem %s5, %s618
      // Predicated region
      $region41: #{nmp_qem_projection_forward.1} parent=39 // pred_check
        %p620 = pneg %p144
      $region42: #{nmp_qem_projection_forward.1} parent=39 // pred_check_branch
        %622 = sbr.rel (%p620) target = $region44
      $region43: #{nmp_qem_projection_forward.1} parent=39 // pred_region
        _
      $region44: #{nmp_qem_projection_forward.1} parent=39 // pred_fallthru
        _
    $region40: #{nmp_qem_projection_forward.1} parent=5 // pred_fallthru
      _
    %p623 = scmp.le.s32.totalorder 2, %s11
    // Predicated region
    $region45: #{nmp_qem_projection_forward.1} parent=5 // pred_check
      %p624 = pneg %p623
    $region46: #{nmp_qem_projection_forward.1} parent=5 // pred_check_branch
      %626 = sbr.rel (%p624) target = $region48
    $region47: #{nmp_qem_projection_forward.1} parent=5 // pred_region
      %s627 = ssub.s32 %s11, 2
      // Predicated region
      $region49: #{nmp_qem_projection_forward.1} parent=47 // pred_check
        %p628 = pneg %p150
      $region50: #{nmp_qem_projection_forward.1} parent=47 // pred_check_branch
        %630 = sbr.rel (%p628) target = $region52
      $region51: #{nmp_qem_projection_forward.1} parent=47 // pred_region
        %p631 = scmp.lt.s32.totalorder %s17, 1
        %s632 = scalar_select %p631, %s17, 1
        %s633 = smul.addr %s632, 4
        %s634 = smul.addr %s633, 8
        %s635 = scalar_lea.vmem %s5, %s634
      $region52: #{nmp_qem_projection_forward.1} parent=47 // pred_fallthru
        _
    $region48: #{nmp_qem_projection_forward.1} parent=5 // pred_fallthru
      _
  $region6: #{nmp_qem_projection_forward.1} parent=0 // loop_footer
    %s15 = sadd.s32 1, %s11
  $region7: #{nmp_qem_projection_forward.1} parent=0 // loop_footer_branch
    %10 = sbr.rel target = $region3
  $region8: #{nmp_qem_projection_forward.1} parent=0 // loop_exit
    _

</llo_original>
